<compile_context>
chip_gen: v5e
topology: v5e:2x2
jax: 0.10.0
libtpu: 0.0.40
codegen_flags: <defaults>
</compile_context>

<pallas_src>
import jax
import jax.numpy as jnp
from jax.experimental import pallas as pl
from jax.experimental.pallas import tpu as pltpu

INPUT_SIZE = 36      # vocab
EMBEDDING_DIM = 16
HIDDEN_SIZE = 128
OUTPUT_SIZE = 1
NUM_LAYERS = 1       # module hard-codes a single RNN layer


def rnn_fused_kernel(tok_ref, table_ref, whh_ref, head_ref, out_ref):
    """Whole forward pass in one invocation (no grid).

    tok_ref   : (T*Bp, 1) int32  time-major flattened tokens (row = t*Bp + b)
    table_ref : (V, H)    f32    embedding @ W_ih^T + (b_ih + b_hh)
    whh_ref   : (H, H)    f32    W_hh^T
    head_ref  : (2, H)    f32    row 0 = w_fc, row 1 = [b_fc, 0, ...]
    out_ref   : (Bp, 1)   f32    sigmoid(fc(h_T))
    """
    TB = tok_ref.shape[0]
    Bp = out_ref.shape[0]
    T = TB // Bp
    V, H = table_ref.shape

    # Fused embedding lookup + hoisted input projection (+ biases) for ALL time
    # steps as a single MXU matmul: each one-hot row has exactly one 1, so this
    # is an exact row-select of the fused table: x_proj[r] = table[tok[r]].
    tok = tok_ref[...]                                                # (T*Bp, 1)
    vocab_iota = jax.lax.broadcasted_iota(jnp.int32, (TB, V), 1)      # (T*Bp, V)
    onehot = (tok == vocab_iota).astype(jnp.float32)
    x_proj = jnp.dot(onehot, table_ref[...],
                     preferred_element_type=jnp.float32)              # (T*Bp, H)

    w_hh = whh_ref[...]                                               # (H, H)
    h = jnp.zeros((Bp, H), jnp.float32)                               # h_0 = 0
    # Static, fully-unrolled recurrence: one (Bp,H)x(H,H) matmul + tanh / step.
    for t in range(T):
        pre = x_proj[t * Bp:(t + 1) * Bp, :] + jnp.dot(
            h, w_hh, preferred_element_type=jnp.float32)
        h = jnp.tanh(pre)

    # fc head (output_size == 1): elementwise mul + lane reduce (XLU) + sigmoid.
    w_fc = head_ref[0:1, :]                                           # (1, H)
    b_fc = head_ref[1:2, 0:1]                                         # (1, 1)
    logits = jnp.sum(h * w_fc, axis=-1, keepdims=True) + b_fc         # (Bp, 1)
    out_ref[...] = jax.nn.sigmoid(logits)


def init_params(key):
    """Deterministic parameter init mirroring PyTorch default shapes/inits."""
    k_emb, k_wih, k_whh, k_bih, k_bhh, k_wfc, k_bfc = jax.random.split(key, 7)
    bound = 1.0 / jnp.sqrt(HIDDEN_SIZE)
    return {
        # nn.Embedding: N(0, 1)
        "embedding": jax.random.normal(k_emb, (INPUT_SIZE, EMBEDDING_DIM), jnp.float32),
        # nn.RNN weights/biases: U(-1/sqrt(H), 1/sqrt(H)), stored (H, E) / (H, H)
        "w_ih": jax.random.uniform(k_wih, (HIDDEN_SIZE, EMBEDDING_DIM), jnp.float32,
                                   -bound, bound),
        "w_hh": jax.random.uniform(k_whh, (HIDDEN_SIZE, HIDDEN_SIZE), jnp.float32,
                                   -bound, bound),
        "b_ih": jax.random.uniform(k_bih, (HIDDEN_SIZE,), jnp.float32, -bound, bound),
        "b_hh": jax.random.uniform(k_bhh, (HIDDEN_SIZE,), jnp.float32, -bound, bound),
        # nn.Linear(H, 1)
        "w_fc": jax.random.uniform(k_wfc, (OUTPUT_SIZE, HIDDEN_SIZE), jnp.float32,
                                   -bound, bound),
        "b_fc": jax.random.uniform(k_bfc, (OUTPUT_SIZE,), jnp.float32, -bound, bound),
    }


@jax.jit
def rnn_model_forward(tokens, params):
    B, T = tokens.shape
    Bp = max(8, ((B + 7) // 8) * 8)   # pad batch to sublane multiple (>= 8)

    # Parameter-only prep (tiny; fused by XLA under jit):
    #   table[v] = embedding[v] @ W_ih^T + (b_ih + b_hh)
    # so the in-kernel one-hot matmul performs the embedding lookup AND the
    # whole hoisted input projection for every time step at once.
    table = (params["embedding"] @ params["w_ih"].T
             + (params["b_ih"] + params["b_hh"])[None, :])            # (V, H)
    w_hh_t = params["w_hh"].T                                         # (H, H)
    head = jnp.zeros((2, HIDDEN_SIZE), jnp.float32)
    head = head.at[0, :].set(params["w_fc"][0])
    head = head.at[1, 0].set(params["b_fc"][0])                       # (2, H)

    # Time-major flattened tokens; padded batch rows use token 0 and are sliced
    # off after the kernel (they never affect the real rows).
    tok_p = jnp.zeros((Bp, T), jnp.int32).at[:B, :].set(tokens)
    tok_tm = tok_p.T.reshape(T * Bp, 1)                               # (T*Bp, 1)

    out = pl.pallas_call(
        rnn_fused_kernel,
        out_shape=jax.ShapeDtypeStruct((Bp, OUTPUT_SIZE), jnp.float32),
        in_specs=[pl.BlockSpec(memory_space=pltpu.MemorySpace.VMEM)] * 4,
        out_specs=pl.BlockSpec(memory_space=pltpu.MemorySpace.VMEM),
        compiler_params=pltpu.CompilerParams(vmem_limit_bytes=32 * 1024 * 1024),
    )(tok_tm, table, w_hh_t, head)
    return out[:B]


def reference_forward(tokens, params):
    """Pure-JAX reference matching the PyTorch forward semantics."""
    x = params["embedding"][tokens]                       # (B, T, E)
    h = jnp.zeros((tokens.shape[0], HIDDEN_SIZE), jnp.float32)

    def step(h, x_t):
        h = jnp.tanh(x_t @ params["w_ih"].T + params["b_ih"]
                     + h @ params["w_hh"].T + params["b_hh"])
        return h, None

    h_last, _ = jax.lax.scan(step, h, jnp.transpose(x, (1, 0, 2)))
    logits = h_last @ params["w_fc"].T + params["b_fc"]   # (B, 1)
    return jax.nn.sigmoid(logits)


if __name__ == "__main__":
    key = jax.random.PRNGKey(0)
    k_param, k_tok = jax.random.split(key)

    B, T = 8, 8   # batch sized to the 8-row sublane height
    tokens = jax.random.randint(k_tok, (B, T), 0, INPUT_SIZE, dtype=jnp.int32)
    params = init_params(k_param)

    out = jax.block_until_ready(rnn_model_forward(tokens, params))
    ref = jax.block_until_ready(reference_forward(tokens, params))

    assert out.shape == (B, OUTPUT_SIZE)
    assert jnp.allclose(out, ref, atol=1e-5, rtol=1e-5), (out, ref)

    print("KERNEL_OK")
</pallas_src>

<mosaic_0001>
module attributes {stable_mosaic.version = 11 : i64} {
  func.func @rnn_fused_kernel(%arg0: memref<64x1xi32, #tpu.memory_space<vmem>>, %arg1: memref<36x128xf32, #tpu.memory_space<vmem>>, %arg2: memref<128x128xf32, #tpu.memory_space<vmem>>, %arg3: memref<2x128xf32, #tpu.memory_space<vmem>>, %arg4: memref<8x1xf32, #tpu.memory_space<vmem>>) attributes {dimension_semantics = [], scalar_prefetch = 0 : i64, scratch_operands = 0 : i64, tpu.core_type = #tpu.core_type<tc>} {
    %c0 = arith.constant 0 : index
    %c0_0 = arith.constant 0 : index
    %0 = vector.load %arg0[%c0, %c0_0] : memref<64x1xi32, #tpu.memory_space<vmem>>, vector<64x1xi32>
    %1 = tpu.iota {dimensions = array<i32: 1>} : vector<64x36xi32>
    %2 = vector.broadcast %0 : vector<64x1xi32> to vector<64x36xi32>
    %3 = arith.cmpi eq, %2, %1 : vector<64x36xi32>
    %4 = arith.extui %3 : vector<64x36xi1> to vector<64x36xi32>
    %5 = arith.sitofp %4 : vector<64x36xi32> to vector<64x36xf32>
    %c0_1 = arith.constant 0 : index
    %c0_2 = arith.constant 0 : index
    %6 = vector.load %arg1[%c0_1, %c0_2] : memref<36x128xf32, #tpu.memory_space<vmem>>, vector<36x128xf32>
    %cst = arith.constant dense<0.000000e+00> : vector<64x128xf32>
    %7 = tpu.matmul %5, %6, %cst {dimension_numbers = #tpu.dot_dimension_numbers<[1], [0], [0], [1], [0, 0, 1, 1], [], []>} : vector<64x36xf32>, vector<36x128xf32>, vector<64x128xf32> -> vector<64x128xf32>
    %c0_3 = arith.constant 0 : index
    %c0_4 = arith.constant 0 : index
    %8 = vector.load %arg2[%c0_3, %c0_4] : memref<128x128xf32, #tpu.memory_space<vmem>>, vector<128x128xf32>
    %cst_5 = arith.constant 0.000000e+00 : f32
    %9 = vector.broadcast %cst_5 : f32 to vector<8x128xf32>
    %10 = vector.extract_strided_slice %7 {offsets = [0, 0], sizes = [8, 128], strides = [1, 1]} : vector<64x128xf32> to vector<8x128xf32>
    %cst_6 = arith.constant dense<0.000000e+00> : vector<8x128xf32>
    %11 = tpu.matmul %9, %8, %cst_6 {dimension_numbers = #tpu.dot_dimension_numbers<[1], [0], [0], [1], [0, 0, 1, 1], [], []>} : vector<8x128xf32>, vector<128x128xf32>, vector<8x128xf32> -> vector<8x128xf32>
    %12 = arith.addf %10, %11 : vector<8x128xf32>
    %13 = math.tanh %12 : vector<8x128xf32>
    %14 = vector.extract_strided_slice %7 {offsets = [8, 0], sizes = [8, 128], strides = [1, 1]} : vector<64x128xf32> to vector<8x128xf32>
    %cst_7 = arith.constant dense<0.000000e+00> : vector<8x128xf32>
    %15 = tpu.matmul %13, %8, %cst_7 {dimension_numbers = #tpu.dot_dimension_numbers<[1], [0], [0], [1], [0, 0, 1, 1], [], []>} : vector<8x128xf32>, vector<128x128xf32>, vector<8x128xf32> -> vector<8x128xf32>
    %16 = arith.addf %14, %15 : vector<8x128xf32>
    %17 = math.tanh %16 : vector<8x128xf32>
    %18 = vector.extract_strided_slice %7 {offsets = [16, 0], sizes = [8, 128], strides = [1, 1]} : vector<64x128xf32> to vector<8x128xf32>
    %cst_8 = arith.constant dense<0.000000e+00> : vector<8x128xf32>
    %19 = tpu.matmul %17, %8, %cst_8 {dimension_numbers = #tpu.dot_dimension_numbers<[1], [0], [0], [1], [0, 0, 1, 1], [], []>} : vector<8x128xf32>, vector<128x128xf32>, vector<8x128xf32> -> vector<8x128xf32>
    %20 = arith.addf %18, %19 : vector<8x128xf32>
    %21 = math.tanh %20 : vector<8x128xf32>
    %22 = vector.extract_strided_slice %7 {offsets = [24, 0], sizes = [8, 128], strides = [1, 1]} : vector<64x128xf32> to vector<8x128xf32>
    %cst_9 = arith.constant dense<0.000000e+00> : vector<8x128xf32>
    %23 = tpu.matmul %21, %8, %cst_9 {dimension_numbers = #tpu.dot_dimension_numbers<[1], [0], [0], [1], [0, 0, 1, 1], [], []>} : vector<8x128xf32>, vector<128x128xf32>, vector<8x128xf32> -> vector<8x128xf32>
    %24 = arith.addf %22, %23 : vector<8x128xf32>
    %25 = math.tanh %24 : vector<8x128xf32>
    %26 = vector.extract_strided_slice %7 {offsets = [32, 0], sizes = [8, 128], strides = [1, 1]} : vector<64x128xf32> to vector<8x128xf32>
    %cst_10 = arith.constant dense<0.000000e+00> : vector<8x128xf32>
    %27 = tpu.matmul %25, %8, %cst_10 {dimension_numbers = #tpu.dot_dimension_numbers<[1], [0], [0], [1], [0, 0, 1, 1], [], []>} : vector<8x128xf32>, vector<128x128xf32>, vector<8x128xf32> -> vector<8x128xf32>
    %28 = arith.addf %26, %27 : vector<8x128xf32>
    %29 = math.tanh %28 : vector<8x128xf32>
    %30 = vector.extract_strided_slice %7 {offsets = [40, 0], sizes = [8, 128], strides = [1, 1]} : vector<64x128xf32> to vector<8x128xf32>
    %cst_11 = arith.constant dense<0.000000e+00> : vector<8x128xf32>
    %31 = tpu.matmul %29, %8, %cst_11 {dimension_numbers = #tpu.dot_dimension_numbers<[1], [0], [0], [1], [0, 0, 1, 1], [], []>} : vector<8x128xf32>, vector<128x128xf32>, vector<8x128xf32> -> vector<8x128xf32>
    %32 = arith.addf %30, %31 : vector<8x128xf32>
    %33 = math.tanh %32 : vector<8x128xf32>
    %34 = vector.extract_strided_slice %7 {offsets = [48, 0], sizes = [8, 128], strides = [1, 1]} : vector<64x128xf32> to vector<8x128xf32>
    %cst_12 = arith.constant dense<0.000000e+00> : vector<8x128xf32>
    %35 = tpu.matmul %33, %8, %cst_12 {dimension_numbers = #tpu.dot_dimension_numbers<[1], [0], [0], [1], [0, 0, 1, 1], [], []>} : vector<8x128xf32>, vector<128x128xf32>, vector<8x128xf32> -> vector<8x128xf32>
    %36 = arith.addf %34, %35 : vector<8x128xf32>
    %37 = math.tanh %36 : vector<8x128xf32>
    %38 = vector.extract_strided_slice %7 {offsets = [56, 0], sizes = [8, 128], strides = [1, 1]} : vector<64x128xf32> to vector<8x128xf32>
    %cst_13 = arith.constant dense<0.000000e+00> : vector<8x128xf32>
    %39 = tpu.matmul %37, %8, %cst_13 {dimension_numbers = #tpu.dot_dimension_numbers<[1], [0], [0], [1], [0, 0, 1, 1], [], []>} : vector<8x128xf32>, vector<128x128xf32>, vector<8x128xf32> -> vector<8x128xf32>
    %40 = arith.addf %38, %39 : vector<8x128xf32>
    %41 = math.tanh %40 : vector<8x128xf32>
    %c0_14 = arith.constant 0 : index
    %c0_15 = arith.constant 0 : index
    %42 = vector.load %arg3[%c0_14, %c0_15] : memref<2x128xf32, #tpu.memory_space<vmem>>, vector<1x128xf32>
    %c1 = arith.constant 1 : index
    %c0_16 = arith.constant 0 : index
    %43 = vector.load %arg3[%c1, %c0_16] : memref<2x128xf32, #tpu.memory_space<vmem>>, vector<1x1xf32>
    %44 = vector.broadcast %42 : vector<1x128xf32> to vector<8x128xf32>
    %45 = arith.mulf %41, %44 : vector<8x128xf32>
    %cst_17 = arith.constant dense<0.000000e+00> : vector<8xf32>
    %46 = vector.multi_reduction <add>, %45, %cst_17 [1] : vector<8x128xf32> to vector<8xf32>
    %47 = vector.shape_cast %46 : vector<8xf32> to vector<8x1xf32>
    %48 = vector.broadcast %43 : vector<1x1xf32> to vector<8x1xf32>
    %49 = arith.addf %47, %48 : vector<8x1xf32>
    %50 = arith.negf %49 : vector<8x1xf32>
    %51 = math.exp %50 : vector<8x1xf32>
    %cst_18 = arith.constant 1.000000e+00 : f32
    %52 = vector.broadcast %cst_18 : f32 to vector<8x1xf32>
    %53 = arith.addf %52, %51 : vector<8x1xf32>
    %54 = arith.divf %52, %53 : vector<8x1xf32>
    %c0_19 = arith.constant 0 : index
    %c0_20 = arith.constant 0 : index
    %55 = vector.load %arg4[%c0_19, %c0_20] : memref<8x1xf32, #tpu.memory_space<vmem>>, vector<8x1xf32>
    tpu.vector_store %arg4[%c0_19, %c0_20], %54 {strides = array<i32>} : memref<8x1xf32, #tpu.memory_space<vmem>>, vector<8x1xf32>,
    return
  }
}

</mosaic_0001>

<llo_original>
// kernel: rnn_model_forward.1
$region0: #{rnn_model_forward.1}
  #allocation0 [shape = 'u32[]', space=smem, size = 0x4, offset = 0x4, fixed_abs, tag = 'smem constant byte address 0x4 - core index']
  #allocation1 [shape = 'u32[72,128]{1,0:T(1,128)}', space=vmem, size = 0x9000, scoped, tag = 'internal scratch']
  %s0 = inlined_call_operand.vmem [shape: s32[64,1], index: 0, kind: input, shape index: {}]
  %s1 = inlined_call_operand.vmem [shape: f32[36,128], index: 1, kind: input, shape index: {}]
  %s2 = inlined_call_operand.vmem [shape: f32[128,128], index: 2, kind: input, shape index: {}]
  %s3 = inlined_call_operand.vmem [shape: f32[2,128], index: 3, kind: input, shape index: {}]
  %s4 = inlined_call_operand.vmem [shape: f32[8,1], index: 4, kind: output, shape index: {}]
  %s5 = sld [smem:[#allocation0]]
  $region26: #{rnn_model_forward.1} parent=0
    _
  %s7 = ssub.s32 1, %s5
  %s8 = scalar_select 0, %s7, %s5
  // Predicated region
  $region2: #{rnn_model_forward.1} parent=0 // pred_check
    _
  $region3: #{rnn_model_forward.1} parent=0 // pred_check_branch
    %10 = sbr.rel (0) target = $region5
  $region4: #{rnn_model_forward.1} parent=0 // pred_region
    _
  $region5: #{rnn_model_forward.1} parent=0 // pred_fallthru
    _
  // Predicated region
  $region6: #{rnn_model_forward.1} parent=0 // pred_check
    _
  $region7: #{rnn_model_forward.1} parent=0 // pred_check_branch
    %12 = sbr.rel (0) target = $region9
  $region8: #{rnn_model_forward.1} parent=0 // pred_region
    _
  $region9: #{rnn_model_forward.1} parent=0 // pred_fallthru
    _
  // Predicated region
  $region10: #{rnn_model_forward.1} parent=0 // pred_check
    _
  $region11: #{rnn_model_forward.1} parent=0 // pred_check_branch
    %14 = sbr.rel (0) target = $region13
  $region12: #{rnn_model_forward.1} parent=0 // pred_region
    _
  $region13: #{rnn_model_forward.1} parent=0 // pred_fallthru
    _
  // Predicated region
  $region14: #{rnn_model_forward.1} parent=0 // pred_check
    _
  $region15: #{rnn_model_forward.1} parent=0 // pred_check_branch
    %16 = sbr.rel (0) target = $region17
  $region16: #{rnn_model_forward.1} parent=0 // pred_region
    _
  $region17: #{rnn_model_forward.1} parent=0 // pred_fallthru
    _
  %v17 = vld [vmem:[%s0] sm:$0xff]
  %v18 = vld [vmem:[%s0 + $0x8] sm:$0xff]
  %v19 = vld [vmem:[%s0 + $0x10] sm:$0xff]
  %v20 = vld [vmem:[%s0 + $0x18] sm:$0xff]
  %v21 = vld [vmem:[%s0 + $0x20] sm:$0xff]
  %v22 = vld [vmem:[%s0 + $0x28] sm:$0xff]
  %v23 = vld [vmem:[%s0 + $0x30] sm:$0xff]
  %v24 = vld [vmem:[%s0 + $0x38] sm:$0xff]
  %v25 = vlaneseq
  %v26 = vand.u32 %v25, 127
  %27 = vset.pattern.permute.xlu0 0
  %28 = vperm.xlu0 %27, %v17
  %v29 = vpop.permute.xlu0 %28
  %30 = vset.pattern.permute.xlu0 0
  %31 = vperm.xlu0 %30, %v18
  %v32 = vpop.permute.xlu0 %31
  %33 = vset.pattern.permute.xlu0 0
  %34 = vperm.xlu0 %33, %v19
  %v35 = vpop.permute.xlu0 %34
  %36 = vset.pattern.permute.xlu0 0
  %37 = vperm.xlu0 %36, %v20
  %v38 = vpop.permute.xlu0 %37
  %39 = vset.pattern.permute.xlu0 0
  %40 = vperm.xlu0 %39, %v21
  %v41 = vpop.permute.xlu0 %40
  %42 = vset.pattern.permute.xlu0 0
  %43 = vperm.xlu0 %42, %v22
  %v44 = vpop.permute.xlu0 %43
  %45 = vset.pattern.permute.xlu0 0
  %46 = vperm.xlu0 %45, %v23
  %v47 = vpop.permute.xlu0 %46
  %48 = vset.pattern.permute.xlu0 0
  %49 = vperm.xlu0 %48, %v24
  %v50 = vpop.permute.xlu0 %49
  %vm51 = vcmp.eq.s32.totalorder %v29, %v26
  %vm52 = vcmp.eq.s32.totalorder %v32, %v26
  %vm53 = vcmp.eq.s32.totalorder %v35, %v26
  %vm54 = vcmp.eq.s32.totalorder %v38, %v26
  %vm55 = vcmp.eq.s32.totalorder %v41, %v26
  %vm56 = vcmp.eq.s32.totalorder %v44, %v26
  %vm57 = vcmp.eq.s32.totalorder %v47, %v26
  %vm58 = vcmp.eq.s32.totalorder %v50, %v26
  %v59 = vsel %vm51, 1, 0
  %v60 = vsel %vm52, 1, 0
  %v61 = vsel %vm53, 1, 0
  %v62 = vsel %vm54, 1, 0
  %v63 = vsel %vm55, 1, 0
  %v64 = vsel %vm56, 1, 0
  %v65 = vsel %vm57, 1, 0
  %v66 = vsel %vm58, 1, 0
  %v67 = vcvt.s32.f32 %v59
  %v68 = vcvt.s32.f32 %v60
  %v69 = vcvt.s32.f32 %v61
  %v70 = vcvt.s32.f32 %v62
  %v71 = vcvt.s32.f32 %v63
  %v72 = vcvt.s32.f32 %v64
  %v73 = vcvt.s32.f32 %v65
  %v74 = vcvt.s32.f32 %v66
  %v75 = vld [vmem:[%s1] sm:$0xff]
  %v76 = vld [vmem:[%s1 + $0x8] sm:$0xff]
  %v77 = vld [vmem:[%s1 + $0x10] sm:$0xff]
  %v78 = vld [vmem:[%s1 + $0x18] sm:$0xff]
  %v79 = vld [vmem:[%s1 + $0x20] sm:$0xf]
  %vm80 = vcmask 293888
  %v82 = vsel %vm80, %v67, 0
  %v85 = vsel %vm80, %v68, 0
  %v88 = vsel %vm80, %v69, 0
  %v91 = vsel %vm80, %v70, 0
  %v94 = vsel %vm80, %v71, 0
  %v97 = vsel %vm80, %v72, 0
  %v100 = vsel %vm80, %v73, 0
  %v103 = vsel %vm80, %v74, 0
  %vm105 = vcmask 1043456
  %v107 = vsel %vm105, %v79, 0
  %109 = vmatpush.msra.mxu0 0.0
  %110 = vmatpush.msra.mxu0 0.0
  %111 = vmatpush.msra.mxu0 0.0
  %112 = vmatpush.msra.mxu0 0.0
  %113 = vmatpush.msra.mxu0 0.0
  %114 = vmatpush.msra.mxu0 0.0
  %115 = vmatpush.msra.mxu0 0.0
  %116 = vmatpush.msra.mxu0 0.0
  %117 = vmatpush.msra.mxu0 0.0
  %118 = vmatpush.msra.mxu0 0.0
  %119 = vmatpush.msra.mxu0 0.0
  %120 = vmatpush.msra.mxu0 %v107
  %121 = vmatpush.msra.mxu0 %v78
  %122 = vmatpush.msra.mxu0 %v77
  %123 = vmatpush.msra.mxu0 %v76
  %124 = vmatpush.msra.mxu0 %v75
  %125 = vmatmul.f32.gmra.mxu0 %v82
  %v126 = vpop.f32.mrf.mxu0
  %v127 = vadd.f32 0.0, %v126
  %128 = vmatmul.f32.gmra.mxu0 %v85
  %v129 = vpop.f32.mrf.mxu0
  %v130 = vadd.f32 0.0, %v129
  %131 = vmatmul.f32.gmra.mxu0 %v88
  %v132 = vpop.f32.mrf.mxu0
  %v133 = vadd.f32 0.0, %v132
  %134 = vmatmul.f32.gmra.mxu0 %v91
  %v135 = vpop.f32.mrf.mxu0
  %v136 = vadd.f32 0.0, %v135
  %137 = vmatmul.f32.gmra.mxu0 %v94
  %v138 = vpop.f32.mrf.mxu0
  %v139 = vadd.f32 0.0, %v138
  %140 = vmatmul.f32.gmra.mxu0 %v97
  %v141 = vpop.f32.mrf.mxu0
  %v142 = vadd.f32 0.0, %v141
  %143 = vmatmul.f32.gmra.mxu0 %v100
  %v144 = vpop.f32.mrf.mxu0
  %v145 = vadd.f32 0.0, %v144
  %146 = vmatmul.f32.gmra.mxu0 %v103
  %v147 = vpop.f32.mrf.mxu0
  %v148 = vadd.f32 0.0, %v147
  %149 = vdwg.mxu0
  %v150 = vld [vmem:[%s2] sm:$0xff]
  %v151 = vld [vmem:[%s2 + $0x8] sm:$0xff]
  %v152 = vld [vmem:[%s2 + $0x10] sm:$0xff]
  %v153 = vld [vmem:[%s2 + $0x18] sm:$0xff]
  %v154 = vld [vmem:[%s2 + $0x20] sm:$0xff]
  %v155 = vld [vmem:[%s2 + $0x28] sm:$0xff]
  %v156 = vld [vmem:[%s2 + $0x30] sm:$0xff]
  %v157 = vld [vmem:[%s2 + $0x38] sm:$0xff]
  %v158 = vld [vmem:[%s2 + $0x40] sm:$0xff]
  %v159 = vld [vmem:[%s2 + $0x48] sm:$0xff]
  %v160 = vld [vmem:[%s2 + $0x50] sm:$0xff]
  %v161 = vld [vmem:[%s2 + $0x58] sm:$0xff]
  %v162 = vld [vmem:[%s2 + $0x60] sm:$0xff]
  %v163 = vld [vmem:[%s2 + $0x68] sm:$0xff]
  %v164 = vld [vmem:[%s2 + $0x70] sm:$0xff]
  %v165 = vld [vmem:[%s2 + $0x78] sm:$0xff]
  %166 = vmatpush.msra.mxu0 %v165
  %167 = vmatpush.msra.mxu0 %v164
  %168 = vmatpush.msra.mxu0 %v163
  %169 = vmatpush.msra.mxu0 %v162
  %170 = vmatpush.msra.mxu0 %v161
  %171 = vmatpush.msra.mxu0 %v160
  %172 = vmatpush.msra.mxu0 %v159
  %173 = vmatpush.msra.mxu0 %v158
  %174 = vmatpush.msra.mxu0 %v157
  %175 = vmatpush.msra.mxu0 %v156
  %176 = vmatpush.msra.mxu0 %v155
  %177 = vmatpush.msra.mxu0 %v154
  %178 = vmatpush.msra.mxu0 %v153
  %179 = vmatpush.msra.mxu0 %v152
  %180 = vmatpush.msra.mxu0 %v151
  %181 = vmatpush.msra.mxu0 %v150
  %182 = vmatmul.f32.gmra.mxu0 0.0
  %v183 = vpop.f32.mrf.mxu0
  %v184 = vadd.f32 0.0, %v183
  %185 = vdwg.mxu0
  %v186 = vadd.f32 %v127, %v184
  %v187 = vtanh.pop %v186
  %188 = vmatpush.msra.mxu0 %v165
  %189 = vmatpush.msra.mxu0 %v164
  %190 = vmatpush.msra.mxu0 %v163
  %191 = vmatpush.msra.mxu0 %v162
  %192 = vmatpush.msra.mxu0 %v161
  %193 = vmatpush.msra.mxu0 %v160
  %194 = vmatpush.msra.mxu0 %v159
  %195 = vmatpush.msra.mxu0 %v158
  %196 = vmatpush.msra.mxu0 %v157
  %197 = vmatpush.msra.mxu0 %v156
  %198 = vmatpush.msra.mxu0 %v155
  %199 = vmatpush.msra.mxu0 %v154
  %200 = vmatpush.msra.mxu0 %v153
  %201 = vmatpush.msra.mxu0 %v152
  %202 = vmatpush.msra.mxu0 %v151
  %203 = vmatpush.msra.mxu0 %v150
  %204 = vmatmul.f32.gmra.mxu0 %v187
  %v205 = vpop.f32.mrf.mxu0
  %v206 = vadd.f32 0.0, %v205
  %207 = vdwg.mxu0
  %v208 = vadd.f32 %v130, %v206
  %v209 = vtanh.pop %v208
  %210 = vmatpush.msra.mxu0 %v165
  %211 = vmatpush.msra.mxu0 %v164
  %212 = vmatpush.msra.mxu0 %v163
  %213 = vmatpush.msra.mxu0 %v162
  %214 = vmatpush.msra.mxu0 %v161
  %215 = vmatpush.msra.mxu0 %v160
  %216 = vmatpush.msra.mxu0 %v159
  %217 = vmatpush.msra.mxu0 %v158
  %218 = vmatpush.msra.mxu0 %v157
  %219 = vmatpush.msra.mxu0 %v156
  %220 = vmatpush.msra.mxu0 %v155
  %221 = vmatpush.msra.mxu0 %v154
  %222 = vmatpush.msra.mxu0 %v153
  %223 = vmatpush.msra.mxu0 %v152
  %224 = vmatpush.msra.mxu0 %v151
  %225 = vmatpush.msra.mxu0 %v150
  %226 = vmatmul.f32.gmra.mxu0 %v209
  %v227 = vpop.f32.mrf.mxu0
  %v228 = vadd.f32 0.0, %v227
  %229 = vdwg.mxu0
  %v230 = vadd.f32 %v133, %v228
  %v231 = vtanh.pop %v230
  %232 = vmatpush.msra.mxu0 %v165
  %233 = vmatpush.msra.mxu0 %v164
  %234 = vmatpush.msra.mxu0 %v163
  %235 = vmatpush.msra.mxu0 %v162
  %236 = vmatpush.msra.mxu0 %v161
  %237 = vmatpush.msra.mxu0 %v160
  %238 = vmatpush.msra.mxu0 %v159
  %239 = vmatpush.msra.mxu0 %v158
  %240 = vmatpush.msra.mxu0 %v157
  %241 = vmatpush.msra.mxu0 %v156
  %242 = vmatpush.msra.mxu0 %v155
  %243 = vmatpush.msra.mxu0 %v154
  %244 = vmatpush.msra.mxu0 %v153
  %245 = vmatpush.msra.mxu0 %v152
  %246 = vmatpush.msra.mxu0 %v151
  %247 = vmatpush.msra.mxu0 %v150
  %248 = vmatmul.f32.gmra.mxu0 %v231
  %v249 = vpop.f32.mrf.mxu0
  %v250 = vadd.f32 0.0, %v249
  %251 = vdwg.mxu0
  %v252 = vadd.f32 %v136, %v250
  %v253 = vtanh.pop %v252
  %254 = vmatpush.msra.mxu0 %v165
  %255 = vmatpush.msra.mxu0 %v164
  %256 = vmatpush.msra.mxu0 %v163
  %257 = vmatpush.msra.mxu0 %v162
  %258 = vmatpush.msra.mxu0 %v161
  %259 = vmatpush.msra.mxu0 %v160
  %260 = vmatpush.msra.mxu0 %v159
  %261 = vmatpush.msra.mxu0 %v158
  %262 = vmatpush.msra.mxu0 %v157
  %263 = vmatpush.msra.mxu0 %v156
  %264 = vmatpush.msra.mxu0 %v155
  %265 = vmatpush.msra.mxu0 %v154
  %266 = vmatpush.msra.mxu0 %v153
  %267 = vmatpush.msra.mxu0 %v152
  %268 = vmatpush.msra.mxu0 %v151
  %269 = vmatpush.msra.mxu0 %v150
  %270 = vmatmul.f32.gmra.mxu0 %v253
  %v271 = vpop.f32.mrf.mxu0
  %v272 = vadd.f32 0.0, %v271
  %273 = vdwg.mxu0
  %v274 = vadd.f32 %v139, %v272
  %v275 = vtanh.pop %v274
  %276 = vmatpush.msra.mxu0 %v165
  %277 = vmatpush.msra.mxu0 %v164
  %278 = vmatpush.msra.mxu0 %v163
  %279 = vmatpush.msra.mxu0 %v162
  %280 = vmatpush.msra.mxu0 %v161
  %281 = vmatpush.msra.mxu0 %v160
  %282 = vmatpush.msra.mxu0 %v159
  %283 = vmatpush.msra.mxu0 %v158
  %284 = vmatpush.msra.mxu0 %v157
  %285 = vmatpush.msra.mxu0 %v156
  %286 = vmatpush.msra.mxu0 %v155
  %287 = vmatpush.msra.mxu0 %v154
  %288 = vmatpush.msra.mxu0 %v153
  %289 = vmatpush.msra.mxu0 %v152
  %290 = vmatpush.msra.mxu0 %v151
  %291 = vmatpush.msra.mxu0 %v150
  %292 = vmatmul.f32.gmra.mxu0 %v275
  %v293 = vpop.f32.mrf.mxu0
  %v294 = vadd.f32 0.0, %v293
  %295 = vdwg.mxu0
  %v296 = vadd.f32 %v142, %v294
  %v297 = vtanh.pop %v296
  %298 = vmatpush.msra.mxu0 %v165
  %299 = vmatpush.msra.mxu0 %v164
  %300 = vmatpush.msra.mxu0 %v163
  %301 = vmatpush.msra.mxu0 %v162
  %302 = vmatpush.msra.mxu0 %v161
  %303 = vmatpush.msra.mxu0 %v160
  %304 = vmatpush.msra.mxu0 %v159
  %305 = vmatpush.msra.mxu0 %v158
  %306 = vmatpush.msra.mxu0 %v157
  %307 = vmatpush.msra.mxu0 %v156
  %308 = vmatpush.msra.mxu0 %v155
  %309 = vmatpush.msra.mxu0 %v154
  %310 = vmatpush.msra.mxu0 %v153
  %311 = vmatpush.msra.mxu0 %v152
  %312 = vmatpush.msra.mxu0 %v151
  %313 = vmatpush.msra.mxu0 %v150
  %314 = vmatmul.f32.gmra.mxu0 %v297
  %v315 = vpop.f32.mrf.mxu0
  %v316 = vadd.f32 0.0, %v315
  %317 = vdwg.mxu0
  %v318 = vadd.f32 %v145, %v316
  %v319 = vtanh.pop %v318
  %320 = vmatpush.msra.mxu0 %v165
  %321 = vmatpush.msra.mxu0 %v164
  %322 = vmatpush.msra.mxu0 %v163
  %323 = vmatpush.msra.mxu0 %v162
  %324 = vmatpush.msra.mxu0 %v161
  %325 = vmatpush.msra.mxu0 %v160
  %326 = vmatpush.msra.mxu0 %v159
  %327 = vmatpush.msra.mxu0 %v158
  %328 = vmatpush.msra.mxu0 %v157
  %329 = vmatpush.msra.mxu0 %v156
  %330 = vmatpush.msra.mxu0 %v155
  %331 = vmatpush.msra.mxu0 %v154
  %332 = vmatpush.msra.mxu0 %v153
  %333 = vmatpush.msra.mxu0 %v152
  %334 = vmatpush.msra.mxu0 %v151
  %335 = vmatpush.msra.mxu0 %v150
  %336 = vmatmul.f32.gmra.mxu0 %v319
  %v337 = vpop.f32.mrf.mxu0
  %v338 = vadd.f32 0.0, %v337
  %339 = vdwg.mxu0
  %v340 = vadd.f32 %v148, %v338
  %v341 = vtanh.pop %v340
  %v342 = vld [vmem:[%s3] sm:$0x1]
  %v343 = vld [vmem:[%s3 + $0x1] sm:$0x1]
  %v344 = vperm.slane %v342, 0
  %v345 = vmul.f32 %v341, %v344
  %346 = vadd.xlane.f32.xlu0 %v345
  %v347 = vpop.xlane.xlu0 %346
  %v348 = vperm.slane %v343, 0
  %v349 = vadd.f32 %v347, %v348
  %v350 = vxor.u32 %v349, 2147483648
  %v351 = vmul.f32 %v350, 1.442695
  %v352 = vpow.pop %v351
  %v353 = vadd.f32 %v352, 1.0
  %v354 = vrcp.pop %v353
  %v355 = vmul.f32 %v353, %v354
  %v356 = vsub.f32 1.0, %v355
  %v357 = vmul.f32 %v354, %v356
  %v358 = vadd.f32 %v354, %v357
  %vm359 = vweird.f32 %v353
  %vm360 = vweird.f32 %v354
  %vm361 = vmor %vm359, %vm360
  %v362 = vsel %vm361, %v354, %v358
  %v363 = vand.u32 2147483647, %v353
  %vm364 = vcmp.eq.f32.partialorder %v363, 8.507059e+37
  %v365 = vand.u32 %v353, 2147483648
  %v366 = vor.u32 1.1754944e-38, %v365
  %v367 = vsel %vm364, %v366, %v362
  %v368 = vmul.f32 1.0, %v367
  %vm369 = vcmask 7168
  %370 = vst.msk [vmem:[%s4] sm:$0xff] %vm369, %v368
  // Predicated region
  $region18: #{rnn_model_forward.1} parent=0 // pred_check
    _
  $region19: #{rnn_model_forward.1} parent=0 // pred_check_branch
    %372 = sbr.rel (0) target = $region21
  $region20: #{rnn_model_forward.1} parent=0 // pred_region
    _
  $region21: #{rnn_model_forward.1} parent=0 // pred_fallthru
    _
  // Predicated region
  $region22: #{rnn_model_forward.1} parent=0 // pred_check
    _
  $region23: #{rnn_model_forward.1} parent=0 // pred_check_branch
    %374 = sbr.rel (0) target = $region25
  $region24: #{rnn_model_forward.1} parent=0 // pred_region
    _
  $region25: #{rnn_model_forward.1} parent=0 // pred_fallthru
    _

</llo_original>
